<compile_context>
chip_gen: v6e
topology: v6e:2x2x1
jax: 0.10.0
libtpu: 0.0.40
codegen_flags: <defaults>
</compile_context>

<pallas_src>
import jax
import jax.numpy as jnp
from jax.experimental import pallas as pl
from jax.experimental.pallas import tpu as pltpu


def _attention_fusion_kernel(feat_ref, wbd_ref, out_ref):
    """One grid step: b_tile independent attention fusions.

    feat_ref: (b_tile, N*D) VMEM, native dtype (instance-major, lane-dense)
    wbd_ref:  (N*D, N)      VMEM, f32 block-diagonal Linear weight (resident)
    out_ref:  (b_tile, D)   VMEM
    """
    bt, d = out_ref.shape
    n = feat_ref.shape[-1] // d
    # The wrapper guarantees bt is a multiple of 8, and a multiple of 128
    # whenever bt > 128, so `chunk` always divides bt exactly.
    chunk = min(bt, 128)
    n_chunks = bt // chunk

    wbd = wbd_ref[...]  # (N*D, N), stays resident across the whole grid

    def body(off):
        # Load one sublane chunk in native dtype, cast once to f32.
        f_blk = feat_ref[pl.ds(off, chunk), :].astype(jnp.float32)   # (chunk, N*D)

        # Per-slot scores on the MXU: scores[b, i] = <f_i(b), w>.
        # (Linear bias cancels under softmax -> never applied.)
        s = jnp.dot(f_blk, wbd, preferred_element_type=jnp.float32)  # (chunk, N)

        # Numerically-stable softmax over the N slots; single exp over one
        # small (chunk, N) tile; exact divide for parity with the reference.
        m = jnp.max(s, axis=-1, keepdims=True)
        p = jnp.exp(s - m)
        inv = 1.0 / jnp.sum(p, axis=-1, keepdims=True)                # (chunk, 1)

        # fused = (sum_i p_i * f_i) / denom   (VPU; batched contraction, not
        # a plain matmul, so it stays off the MXU).
        acc = p[:, 0:1] * f_blk[:, 0:d]
        for i in range(1, n):
            acc = acc + p[:, i:i + 1] * f_blk[:, i * d:(i + 1) * d]
        out_ref[pl.ds(off, chunk), :] = (acc * inv).astype(out_ref.dtype)

    if n_chunks == 1:
        body(0)
    else:
        def loop_body(c, carry):
            body(pl.multiple_of(c * chunk, chunk))
            return carry
        jax.lax.fori_loop(0, n_chunks, loop_body, None, unroll=True)


def _round_up(x, m):
    return ((x + m - 1) // m) * m


def _pick_b_tile(b_pad8, max_b_tile):
    """Pick a batch tile: big blocks (amortize per-step overhead), grid >= 2
    when there is enough work (v7x dual-TC), multiple of 128 above 128 rows
    (clean in-kernel chunking), capped for VMEM headroom on every gen."""
    if b_pad8 <= 128:
        half = b_pad8 // 2
        return half if (half >= 8 and half % 8 == 0) else b_pad8
    return min(max_b_tile, _round_up(pl.cdiv(b_pad8, 2), 128))


def attention_mechanism(features, weight, bias, *, max_b_tile=512):
    """AttentionMechanism forward.

    features: (N, D) single instance (original module semantics) or
              (B, N, D) batch of independent instances (shared Linear params).
    weight:   (D,)  -- nn.Linear(D, 1) weight row
    bias:     ()    -- nn.Linear(D, 1) bias (cancels exactly under softmax)
    Returns (D,) or (B, D) in the features dtype.
    """
    del bias  # softmax(s + b) == softmax(s): the shared bias cancels exactly.

    single = features.ndim == 2
    if single:
        features = features[None]
    B, N, D = features.shape

    # Block-diagonal weight: column i holds w in rows i*D:(i+1)*D, so a single
    # MXU dot f_flat @ wbd yields all N per-slot scores.  Replaces jnp.tile.
    wbd = jnp.kron(jnp.eye(N, dtype=jnp.float32),
                   weight.astype(jnp.float32)[:, None])      # (N*D, N)

    # Free contiguous reshape: instance b's N feature vectors occupy one
    # lane-dense row of N*D elements, in native dtype (no wrapper up-cast).
    f_flat = features.reshape(B, N * D)

    b_pad8 = _round_up(B, 8)
    b_tile = _pick_b_tile(b_pad8, max_b_tile)
    b_padded = _round_up(B, b_tile)
    if b_padded != B:
        # Pad instead of shrinking the tile: avoids sublane-1 blocks and an
        # overhead-dominated grid.  Pad rows are zeros (finite) and sliced off.
        f_flat = jnp.pad(f_flat, ((0, b_padded - B), (0, 0)))

    out = pl.pallas_call(
        _attention_fusion_kernel,
        grid=(b_padded // b_tile,),
        in_specs=[
            pl.BlockSpec((b_tile, N * D), lambda i: (i, 0)),   # features, native dtype
            pl.BlockSpec((N * D, N), lambda i: (0, 0)),        # resident block-diag weight
        ],
        out_specs=pl.BlockSpec((b_tile, D), lambda i: (i, 0)),
        out_shape=jax.ShapeDtypeStruct((b_padded, D), features.dtype),
        # Batch axis is embarrassingly parallel -> v7x's two TCs can split it.
        # With b_tile <= 512 the working set (<= ~2.5 MiB incl. double
        # buffering) sits far below v5e's 16 MiB scoped default and v7x's
        # 64 MiB physical VMEM; raise vmem_limit_bytes only if max_b_tile is
        # ever scaled past ~2K rows.
        compiler_params=pltpu.CompilerParams(
            dimension_semantics=("parallel",),
        ),
    )(f_flat, wbd)

    out = out[:B]
    return out[0] if single else out


def _reference(f, w, b):
    """Pure-JAX reference for one instance: (N, D) -> (D,)."""
    s = f @ w[:, None] + b                      # (N, 1)
    a = jax.nn.softmax(s, axis=0)               # softmax over the N features
    return jnp.sum(a * f, axis=0)               # (D,)


if __name__ == "__main__":
    D = 64          # module default feature_dim
    N = 8           # number of feature vectors per instance
    B = 64          # batch of independent AttentionMechanism forwards

    key = jax.random.PRNGKey(0)
    k_feat, k_w, k_b = jax.random.split(key, 3)

    feats = jax.random.normal(k_feat, (B, N, D), jnp.float32)
    bound = 1.0 / (D ** 0.5)
    weight = jax.random.uniform(k_w, (D,), jnp.float32, -bound, bound)
    bias = jax.random.uniform(k_b, (), jnp.float32, -bound, bound)

    ref_batch = jax.vmap(_reference, in_axes=(0, None, None))

    # 1) Single instance: exactly the original module's forward.
    fused1 = jax.block_until_ready(attention_mechanism(feats[0], weight, bias))
    ref1 = _reference(feats[0], weight, bias)
    assert fused1.shape == (D,)
    assert jnp.allclose(fused1, ref1, atol=1e-4, rtol=1e-4), "single-instance mismatch"

    # 2) Batched f32: one gridded pallas_call over all B instances.
    fused_b = jax.block_until_ready(attention_mechanism(feats, weight, bias))
    ref_b = ref_batch(feats, weight, bias)
    assert fused_b.shape == (B, D)
    assert jnp.allclose(fused_b, ref_b, atol=1e-4, rtol=1e-4), "batched mismatch"

    # 3) Batched bf16 features: narrow DMA, f32 in-kernel compute.
    feats_bf = feats.astype(jnp.bfloat16)
    fused_bf = jax.block_until_ready(attention_mechanism(feats_bf, weight, bias))
    ref_bf = ref_batch(feats_bf.astype(jnp.float32), weight, bias)
    assert fused_bf.dtype == jnp.bfloat16
    assert jnp.allclose(fused_bf.astype(jnp.float32), ref_bf,
                        atol=1e-2, rtol=2e-2), "bf16 mismatch"

    # 4) Ragged batch (B=13): exercises the pad-to-tile path (no b_tile=1 fallback).
    feats13 = jax.random.normal(jax.random.PRNGKey(1), (13, N, D), jnp.float32)
    fused13 = jax.block_until_ready(attention_mechanism(feats13, weight, bias))
    ref13 = ref_batch(feats13, weight, bias)
    assert fused13.shape == (13, D)
    assert jnp.allclose(fused13, ref13, atol=1e-4, rtol=1e-4), "ragged-batch mismatch"

    # 5) Larger batch (B=512): exercises big tiles + in-kernel chunked fori_loop.
    feats512 = jax.random.normal(jax.random.PRNGKey(2), (512, N, D), jnp.float32)
    fused512 = jax.block_until_ready(attention_mechanism(feats512, weight, bias))
    ref512 = ref_batch(feats512, weight, bias)
    assert fused512.shape == (512, D)
    assert jnp.allclose(fused512, ref512, atol=1e-4, rtol=1e-4), "large-batch mismatch"

    print("KERNEL_OK")
</pallas_src>

<mosaic_0001>
module attributes {stable_mosaic.version = 11 : i64} {
  func.func @_attention_fusion_kernel(%arg0: i32, %arg1: memref<8x512xf32, #tpu.memory_space<vmem>>, %arg2: memref<512x8xf32, #tpu.memory_space<vmem>>, %arg3: memref<8x64xf32, #tpu.memory_space<vmem>>) attributes {dimension_semantics = [#tpu.dimension_semantics<parallel>], iteration_bounds = array<i64: 1>, scalar_prefetch = 0 : i64, scratch_operands = 0 : i64, tpu.core_type = #tpu.core_type<tc>, window_params = [{transform_indices = @transform_0, window_bounds = array<i64: 8, 512>}, {pipeline_mode = #tpu.pipeline_mode<synchronous>, transform_indices = @transform_1, window_bounds = array<i64: 512, 8>}, {transform_indices = @transform_2, window_bounds = array<i64: 8, 64>}]} {
    %c0 = arith.constant 0 : index
    %c0_0 = arith.constant 0 : index
    %0 = vector.load %arg2[%c0, %c0_0] : memref<512x8xf32, #tpu.memory_space<vmem>>, vector<512x8xf32>
    %c0_1 = arith.constant 0 : index
    %c0_2 = arith.constant 0 : index
    %1 = vector.load %arg1[%c0_1, %c0_2] : memref<8x512xf32, #tpu.memory_space<vmem>>, vector<8x512xf32>
    %cst = arith.constant dense<0.000000e+00> : vector<8x8xf32>
    %2 = tpu.matmul %1, %0, %cst {dimension_numbers = #tpu.dot_dimension_numbers<[1], [0], [0], [1], [0, 0, 1, 1], [], []>} : vector<8x512xf32>, vector<512x8xf32>, vector<8x8xf32> -> vector<8x8xf32>
    %cst_3 = arith.constant dense<0xFF800000> : vector<8xf32>
    %3 = vector.multi_reduction <maximumf>, %2, %cst_3 [1] : vector<8x8xf32> to vector<8xf32>
    %4 = vector.shape_cast %3 : vector<8xf32> to vector<8x1xf32>
    %5 = vector.broadcast %4 : vector<8x1xf32> to vector<8x8xf32>
    %6 = arith.subf %2, %5 : vector<8x8xf32>
    %7 = math.exp %6 : vector<8x8xf32>
    %cst_4 = arith.constant dense<0.000000e+00> : vector<8xf32>
    %8 = vector.multi_reduction <add>, %7, %cst_4 [1] : vector<8x8xf32> to vector<8xf32>
    %9 = vector.shape_cast %8 : vector<8xf32> to vector<8x1xf32>
    %cst_5 = arith.constant 1.000000e+00 : f32
    %10 = vector.broadcast %cst_5 : f32 to vector<8x1xf32>
    %11 = arith.divf %10, %9 : vector<8x1xf32>
    %12 = vector.extract_strided_slice %7 {offsets = [0, 0], sizes = [8, 1], strides = [1, 1]} : vector<8x8xf32> to vector<8x1xf32>
    %13 = vector.extract_strided_slice %1 {offsets = [0, 0], sizes = [8, 64], strides = [1, 1]} : vector<8x512xf32> to vector<8x64xf32>
    %14 = vector.broadcast %12 : vector<8x1xf32> to vector<8x64xf32>
    %15 = arith.mulf %14, %13 : vector<8x64xf32>
    %16 = vector.extract_strided_slice %7 {offsets = [0, 1], sizes = [8, 1], strides = [1, 1]} : vector<8x8xf32> to vector<8x1xf32>
    %17 = vector.extract_strided_slice %1 {offsets = [0, 64], sizes = [8, 64], strides = [1, 1]} : vector<8x512xf32> to vector<8x64xf32>
    %18 = vector.broadcast %16 : vector<8x1xf32> to vector<8x64xf32>
    %19 = arith.mulf %18, %17 : vector<8x64xf32>
    %20 = arith.addf %15, %19 : vector<8x64xf32>
    %21 = vector.extract_strided_slice %7 {offsets = [0, 2], sizes = [8, 1], strides = [1, 1]} : vector<8x8xf32> to vector<8x1xf32>
    %22 = vector.extract_strided_slice %1 {offsets = [0, 128], sizes = [8, 64], strides = [1, 1]} : vector<8x512xf32> to vector<8x64xf32>
    %23 = vector.broadcast %21 : vector<8x1xf32> to vector<8x64xf32>
    %24 = arith.mulf %23, %22 : vector<8x64xf32>
    %25 = arith.addf %20, %24 : vector<8x64xf32>
    %26 = vector.extract_strided_slice %7 {offsets = [0, 3], sizes = [8, 1], strides = [1, 1]} : vector<8x8xf32> to vector<8x1xf32>
    %27 = vector.extract_strided_slice %1 {offsets = [0, 192], sizes = [8, 64], strides = [1, 1]} : vector<8x512xf32> to vector<8x64xf32>
    %28 = vector.broadcast %26 : vector<8x1xf32> to vector<8x64xf32>
    %29 = arith.mulf %28, %27 : vector<8x64xf32>
    %30 = arith.addf %25, %29 : vector<8x64xf32>
    %31 = vector.extract_strided_slice %7 {offsets = [0, 4], sizes = [8, 1], strides = [1, 1]} : vector<8x8xf32> to vector<8x1xf32>
    %32 = vector.extract_strided_slice %1 {offsets = [0, 256], sizes = [8, 64], strides = [1, 1]} : vector<8x512xf32> to vector<8x64xf32>
    %33 = vector.broadcast %31 : vector<8x1xf32> to vector<8x64xf32>
    %34 = arith.mulf %33, %32 : vector<8x64xf32>
    %35 = arith.addf %30, %34 : vector<8x64xf32>
    %36 = vector.extract_strided_slice %7 {offsets = [0, 5], sizes = [8, 1], strides = [1, 1]} : vector<8x8xf32> to vector<8x1xf32>
    %37 = vector.extract_strided_slice %1 {offsets = [0, 320], sizes = [8, 64], strides = [1, 1]} : vector<8x512xf32> to vector<8x64xf32>
    %38 = vector.broadcast %36 : vector<8x1xf32> to vector<8x64xf32>
    %39 = arith.mulf %38, %37 : vector<8x64xf32>
    %40 = arith.addf %35, %39 : vector<8x64xf32>
    %41 = vector.extract_strided_slice %7 {offsets = [0, 6], sizes = [8, 1], strides = [1, 1]} : vector<8x8xf32> to vector<8x1xf32>
    %42 = vector.extract_strided_slice %1 {offsets = [0, 384], sizes = [8, 64], strides = [1, 1]} : vector<8x512xf32> to vector<8x64xf32>
    %43 = vector.broadcast %41 : vector<8x1xf32> to vector<8x64xf32>
    %44 = arith.mulf %43, %42 : vector<8x64xf32>
    %45 = arith.addf %40, %44 : vector<8x64xf32>
    %46 = vector.extract_strided_slice %7 {offsets = [0, 7], sizes = [8, 1], strides = [1, 1]} : vector<8x8xf32> to vector<8x1xf32>
    %47 = vector.extract_strided_slice %1 {offsets = [0, 448], sizes = [8, 64], strides = [1, 1]} : vector<8x512xf32> to vector<8x64xf32>
    %48 = vector.broadcast %46 : vector<8x1xf32> to vector<8x64xf32>
    %49 = arith.mulf %48, %47 : vector<8x64xf32>
    %50 = arith.addf %45, %49 : vector<8x64xf32>
    %51 = vector.broadcast %11 : vector<8x1xf32> to vector<8x64xf32>
    %52 = arith.mulf %50, %51 : vector<8x64xf32>
    %c0_6 = arith.constant 0 : index
    %c0_7 = arith.constant 0 : index
    %53 = vector.load %arg3[%c0_6, %c0_7] : memref<8x64xf32, #tpu.memory_space<vmem>>, vector<8x64xf32>
    tpu.vector_store %arg3[%c0_6, %c0_7], %52 {strides = array<i32>} : memref<8x64xf32, #tpu.memory_space<vmem>>, vector<8x64xf32>,
    return
  }
  func.func @transform_0(%arg0: i32) -> (i32, i32) {
    %c0_i32 = arith.constant 0 : i32
    %c0_i32_0 = arith.constant 0 : i32
    return %arg0, %c0_i32 : i32, i32
  }
  func.func @transform_1(%arg0: i32) -> (i32, i32) {
    %c0_i32 = arith.constant 0 : i32
    %c0_i32_0 = arith.constant 0 : i32
    %c0_i32_1 = arith.constant 0 : i32
    return %c0_i32, %c0_i32_0 : i32, i32
  }
  func.func @transform_2(%arg0: i32) -> (i32, i32) {
    %c0_i32 = arith.constant 0 : i32
    %c0_i32_0 = arith.constant 0 : i32
    return %arg0, %c0_i32 : i32, i32
  }
}

</mosaic_0001>

<llo_original>
// kernel: tpu_custom_call.1
$region0: #{tpu_custom_call.1}
  #allocation0 [shape = 'u32[]', space=smem, size = 0x4, offset = 0x4, fixed_abs, tag = 'smem constant byte address 0x4 - core index']
  #allocation1 [shape = 'u32[144,128]{1,0:T(1,128)}', space=vmem, size = 0x12000, scoped, tag = 'internal scratch']
  %s0 = inlined_call_operand.vmem [shape: f32[8,512], index: 0, kind: input, shape index: {}]
  %s1 = inlined_call_operand.vmem [shape: f32[512,8], index: 1, kind: input, shape index: {}]
  %s2 = inlined_call_operand.hbm [shape: f32[8,64], index: 2, kind: output, shape index: {}]
  %s3 = sld [smem:[#allocation0]]
  $region18: #{tpu_custom_call.1} parent=0
    _
  %s5 = ssub.s32 1, %s3
  %s6 = scalar_select 0, %s5, %s3
  $region1: #{tpu_custom_call.1} parent=0
    #allocation2 [shape = 'u8[4096]{0}', space=vmem, size = 0x1000, scoped, tag = 'output window, operand 0, single buffered']
    #allocation3 [shape = 's32[1]{0}', space=sflag, size = 0x4, scoped, tag = 'scoped memory for tpu_custom_call.1']
    %7 = vsyncpa [#allocation3], 0
    // Predicated region
    $region2: #{tpu_custom_call.1} parent=1 // pred_check
      _
    $region3: #{tpu_custom_call.1} parent=1 // pred_check_branch
      %9 = sbr.rel (0) target = $region5
    $region4: #{tpu_custom_call.1} parent=1 // pred_region
      _
    $region5: #{tpu_custom_call.1} parent=1 // pred_fallthru
      _
    // Predicated region
    $region6: #{tpu_custom_call.1} parent=1 // pred_check
      _
    $region7: #{tpu_custom_call.1} parent=1 // pred_check_branch
      %11 = sbr.rel (0) target = $region9
    $region8: #{tpu_custom_call.1} parent=1 // pred_region
      _
    $region9: #{tpu_custom_call.1} parent=1 // pred_fallthru
      _
    %v12 = vld [vmem:[%s1] sm:$0xff]
    %v13 = vld [vmem:[%s1 + $0x8] sm:$0xff]
    %v14 = vld [vmem:[%s1 + $0x10] sm:$0xff]
    %v15 = vld [vmem:[%s1 + $0x18] sm:$0xff]
    %v16 = vld [vmem:[%s1 + $0x20] sm:$0xff]
    %v17 = vld [vmem:[%s1 + $0x28] sm:$0xff]
    %v18 = vld [vmem:[%s1 + $0x30] sm:$0xff]
    %v19 = vld [vmem:[%s1 + $0x38] sm:$0xff]
    %v20 = vld [vmem:[%s1 + $0x40] sm:$0xff]
    %v21 = vld [vmem:[%s1 + $0x48] sm:$0xff]
    %v22 = vld [vmem:[%s1 + $0x50] sm:$0xff]
    %v23 = vld [vmem:[%s1 + $0x58] sm:$0xff]
    %v24 = vld [vmem:[%s1 + $0x60] sm:$0xff]
    %v25 = vld [vmem:[%s1 + $0x68] sm:$0xff]
    %v26 = vld [vmem:[%s1 + $0x70] sm:$0xff]
    %v27 = vld [vmem:[%s1 + $0x78] sm:$0xff]
    %v28 = vld [vmem:[%s1 + $0x80] sm:$0xff]
    %v29 = vld [vmem:[%s1 + $0x88] sm:$0xff]
    %v30 = vld [vmem:[%s1 + $0x90] sm:$0xff]
    %v31 = vld [vmem:[%s1 + $0x98] sm:$0xff]
    %v32 = vld [vmem:[%s1 + $0xa0] sm:$0xff]
    %v33 = vld [vmem:[%s1 + $0xa8] sm:$0xff]
    %v34 = vld [vmem:[%s1 + $0xb0] sm:$0xff]
    %v35 = vld [vmem:[%s1 + $0xb8] sm:$0xff]
    %v36 = vld [vmem:[%s1 + $0xc0] sm:$0xff]
    %v37 = vld [vmem:[%s1 + $0xc8] sm:$0xff]
    %v38 = vld [vmem:[%s1 + $0xd0] sm:$0xff]
    %v39 = vld [vmem:[%s1 + $0xd8] sm:$0xff]
    %v40 = vld [vmem:[%s1 + $0xe0] sm:$0xff]
    %v41 = vld [vmem:[%s1 + $0xe8] sm:$0xff]
    %v42 = vld [vmem:[%s1 + $0xf0] sm:$0xff]
    %v43 = vld [vmem:[%s1 + $0xf8] sm:$0xff]
    %v44 = vld [vmem:[%s1 + $0x100] sm:$0xff]
    %v45 = vld [vmem:[%s1 + $0x108] sm:$0xff]
    %v46 = vld [vmem:[%s1 + $0x110] sm:$0xff]
    %v47 = vld [vmem:[%s1 + $0x118] sm:$0xff]
    %v48 = vld [vmem:[%s1 + $0x120] sm:$0xff]
    %v49 = vld [vmem:[%s1 + $0x128] sm:$0xff]
    %v50 = vld [vmem:[%s1 + $0x130] sm:$0xff]
    %v51 = vld [vmem:[%s1 + $0x138] sm:$0xff]
    %v52 = vld [vmem:[%s1 + $0x140] sm:$0xff]
    %v53 = vld [vmem:[%s1 + $0x148] sm:$0xff]
    %v54 = vld [vmem:[%s1 + $0x150] sm:$0xff]
    %v55 = vld [vmem:[%s1 + $0x158] sm:$0xff]
    %v56 = vld [vmem:[%s1 + $0x160] sm:$0xff]
    %v57 = vld [vmem:[%s1 + $0x168] sm:$0xff]
    %v58 = vld [vmem:[%s1 + $0x170] sm:$0xff]
    %v59 = vld [vmem:[%s1 + $0x178] sm:$0xff]
    %v60 = vld [vmem:[%s1 + $0x180] sm:$0xff]
    %v61 = vld [vmem:[%s1 + $0x188] sm:$0xff]
    %v62 = vld [vmem:[%s1 + $0x190] sm:$0xff]
    %v63 = vld [vmem:[%s1 + $0x198] sm:$0xff]
    %v64 = vld [vmem:[%s1 + $0x1a0] sm:$0xff]
    %v65 = vld [vmem:[%s1 + $0x1a8] sm:$0xff]
    %v66 = vld [vmem:[%s1 + $0x1b0] sm:$0xff]
    %v67 = vld [vmem:[%s1 + $0x1b8] sm:$0xff]
    %v68 = vld [vmem:[%s1 + $0x1c0] sm:$0xff]
    %v69 = vld [vmem:[%s1 + $0x1c8] sm:$0xff]
    %v70 = vld [vmem:[%s1 + $0x1d0] sm:$0xff]
    %v71 = vld [vmem:[%s1 + $0x1d8] sm:$0xff]
    %v72 = vld [vmem:[%s1 + $0x1e0] sm:$0xff]
    %v73 = vld [vmem:[%s1 + $0x1e8] sm:$0xff]
    %v74 = vld [vmem:[%s1 + $0x1f0] sm:$0xff]
    %v75 = vld [vmem:[%s1 + $0x1f8] sm:$0xff]
    %v76 = vld [vmem:[%s0] sm:$0xff]
    %v77 = vld [vmem:[%s0 + $0x8] sm:$0xff]
    %v78 = vld [vmem:[%s0 + $0x10] sm:$0xff]
    %v79 = vld [vmem:[%s0 + $0x18] sm:$0xff]
    %80 = vmatprep.subr.mxu0 0.0
    %81 = vmatpush1.msra.mxu0 %v27
    %82 = vmatprep.subr.mxu0 0.0
    %83 = vmatpush1.msra.mxu0 %v26
    %84 = vmatprep.subr.mxu0 0.0
    %85 = vmatpush1.msra.mxu0 %v25
    %86 = vmatprep.subr.mxu0 0.0
    %87 = vmatpush1.msra.mxu0 %v24
    %88 = vmatprep.subr.mxu0 0.0
    %89 = vmatpush1.msra.mxu0 %v23
    %90 = vmatprep.subr.mxu0 0.0
    %91 = vmatpush1.msra.mxu0 %v22
    %92 = vmatprep.subr.mxu0 0.0
    %93 = vmatpush1.msra.mxu0 %v21
    %94 = vmatprep.subr.mxu0 0.0
    %95 = vmatpush1.msra.mxu0 %v20
    %96 = vmatprep.subr.mxu0 0.0
    %97 = vmatpush1.msra.mxu0 %v19
    %98 = vmatprep.subr.mxu0 0.0
    %99 = vmatpush1.msra.mxu0 %v18
    %100 = vmatprep.subr.mxu0 0.0
    %101 = vmatpush1.msra.mxu0 %v17
    %102 = vmatprep.subr.mxu0 0.0
    %103 = vmatpush1.msra.mxu0 %v16
    %104 = vmatprep.subr.mxu0 0.0
    %105 = vmatpush1.msra.mxu0 %v15
    %106 = vmatprep.subr.mxu0 0.0
    %107 = vmatpush1.msra.mxu0 %v14
    %108 = vmatprep.subr.mxu0 0.0
    %109 = vmatpush1.msra.mxu0 %v13
    %110 = vmatprep.subr.mxu0 0.0
    %111 = vmatpush1.msra.mxu0 %v12
    %112 = vmatprep.subr.mxu0 0.0
    %113 = vmatpush2.msra.mxu0 %v43
    %114 = vmatprep.subr.mxu0 0.0
    %115 = vmatpush2.msra.mxu0 %v42
    %116 = vmatprep.subr.mxu0 0.0
    %117 = vmatpush2.msra.mxu0 %v41
    %118 = vmatprep.subr.mxu0 0.0
    %119 = vmatpush2.msra.mxu0 %v40
    %120 = vmatprep.subr.mxu0 0.0
    %121 = vmatpush2.msra.mxu0 %v39
    %122 = vmatprep.subr.mxu0 0.0
    %123 = vmatpush2.msra.mxu0 %v38
    %124 = vmatprep.subr.mxu0 0.0
    %125 = vmatpush2.msra.mxu0 %v37
    %126 = vmatprep.subr.mxu0 0.0
    %127 = vmatpush2.msra.mxu0 %v36
    %128 = vmatprep.subr.mxu0 0.0
    %129 = vmatpush2.msra.mxu0 %v35
    %130 = vmatprep.subr.mxu0 0.0
    %131 = vmatpush2.msra.mxu0 %v34
    %132 = vmatprep.subr.mxu0 0.0
    %133 = vmatpush2.msra.mxu0 %v33
    %134 = vmatprep.subr.mxu0 0.0
    %135 = vmatpush2.msra.mxu0 %v32
    %136 = vmatprep.subr.mxu0 0.0
    %137 = vmatpush2.msra.mxu0 %v31
    %138 = vmatprep.subr.mxu0 0.0
    %139 = vmatpush2.msra.mxu0 %v30
    %140 = vmatprep.subr.mxu0 0.0
    %141 = vmatpush2.msra.mxu0 %v29
    %142 = vmatprep.subr.mxu0 0.0
    %143 = vmatpush2.msra.mxu0 %v28
    %144 = vmatprep.mubr.f32.mxu0 %v77
    %145 = vmatmul.mubr.f32.gmra.mxu0 %v76
    %v146 = vpop.f32.mrf.mxu0
    %v147 = vadd.f32 0.0, %v146
    %v148 = vpop.f32.mrf.mxu0
    %149 = vdwg.mxu0
    %150 = vmatprep.subr.mxu0 0.0
    %151 = vmatpush1.msra.mxu0 %v59
    %152 = vmatprep.subr.mxu0 0.0
    %153 = vmatpush1.msra.mxu0 %v58
    %154 = vmatprep.subr.mxu0 0.0
    %155 = vmatpush1.msra.mxu0 %v57
    %156 = vmatprep.subr.mxu0 0.0
    %157 = vmatpush1.msra.mxu0 %v56
    %158 = vmatprep.subr.mxu0 0.0
    %159 = vmatpush1.msra.mxu0 %v55
    %160 = vmatprep.subr.mxu0 0.0
    %161 = vmatpush1.msra.mxu0 %v54
    %162 = vmatprep.subr.mxu0 0.0
    %163 = vmatpush1.msra.mxu0 %v53
    %164 = vmatprep.subr.mxu0 0.0
    %165 = vmatpush1.msra.mxu0 %v52
    %166 = vmatprep.subr.mxu0 0.0
    %167 = vmatpush1.msra.mxu0 %v51
    %168 = vmatprep.subr.mxu0 0.0
    %169 = vmatpush1.msra.mxu0 %v50
    %170 = vmatprep.subr.mxu0 0.0
    %171 = vmatpush1.msra.mxu0 %v49
    %172 = vmatprep.subr.mxu0 0.0
    %173 = vmatpush1.msra.mxu0 %v48
    %174 = vmatprep.subr.mxu0 0.0
    %175 = vmatpush1.msra.mxu0 %v47
    %176 = vmatprep.subr.mxu0 0.0
    %177 = vmatpush1.msra.mxu0 %v46
    %178 = vmatprep.subr.mxu0 0.0
    %179 = vmatpush1.msra.mxu0 %v45
    %180 = vmatprep.subr.mxu0 0.0
    %181 = vmatpush1.msra.mxu0 %v44
    %182 = vmatprep.subr.mxu0 0.0
    %183 = vmatpush2.msra.mxu0 %v75
    %184 = vmatprep.subr.mxu0 0.0
    %185 = vmatpush2.msra.mxu0 %v74
    %186 = vmatprep.subr.mxu0 0.0
    %187 = vmatpush2.msra.mxu0 %v73
    %188 = vmatprep.subr.mxu0 0.0
    %189 = vmatpush2.msra.mxu0 %v72
    %190 = vmatprep.subr.mxu0 0.0
    %191 = vmatpush2.msra.mxu0 %v71
    %192 = vmatprep.subr.mxu0 0.0
    %193 = vmatpush2.msra.mxu0 %v70
    %194 = vmatprep.subr.mxu0 0.0
    %195 = vmatpush2.msra.mxu0 %v69
    %196 = vmatprep.subr.mxu0 0.0
    %197 = vmatpush2.msra.mxu0 %v68
    %198 = vmatprep.subr.mxu0 0.0
    %199 = vmatpush2.msra.mxu0 %v67
    %200 = vmatprep.subr.mxu0 0.0
    %201 = vmatpush2.msra.mxu0 %v66
    %202 = vmatprep.subr.mxu0 0.0
    %203 = vmatpush2.msra.mxu0 %v65
    %204 = vmatprep.subr.mxu0 0.0
    %205 = vmatpush2.msra.mxu0 %v64
    %206 = vmatprep.subr.mxu0 0.0
    %207 = vmatpush2.msra.mxu0 %v63
    %208 = vmatprep.subr.mxu0 0.0
    %209 = vmatpush2.msra.mxu0 %v62
    %210 = vmatprep.subr.mxu0 0.0
    %211 = vmatpush2.msra.mxu0 %v61
    %212 = vmatprep.subr.mxu0 0.0
    %213 = vmatpush2.msra.mxu0 %v60
    %214 = vmatprep.mubr.f32.mxu0 %v79
    %215 = vmatmul.mubr.f32.gmra.mxu0 %v78
    %v216 = vpop.f32.mrf.mxu0
    %v217 = vadd.f32 %v147, %v216
    %v218 = vpop.f32.mrf.mxu0
    %219 = vdwg.mxu0
    %vm220 = vcmask 64512
    %v221 = vsel %vm220, %v217, -inf
    %222 = vmax.xlane.f32.xlu0 %v221
    %v223 = vpop.xlane.xlu0 %222
    %v224 = vsub.f32 %v217, %v223
    %v225 = vmul.f32 %v224, 1.442695
    %v226 = vpow.pop %v225
    %v227 = vsel %vm220, %v226, 0.0
    %228 = vadd.xlane.f32.xlu0 %v227
    %v229 = vpop.xlane.xlu0 %228
    %v230 = vrcp.pop %v229
    %v231 = vmul.f32 1.0, %v230
    %233 = vset.pattern.permute.xlu0 0
    %234 = vperm.xlu0 %233, %v226
    %v235 = vpop.permute.xlu0 %234
    %v237 = vmul.f32 %v235, %v76
    %238 = vset.pattern.permute.xlu0 1
    %239 = vperm.xlu0 %238, %v226
    %v240 = vpop.permute.xlu0 %239
    %v242 = vmul.f32 %v240, %v76
    %244 = vrot.lane.b32.xlu0 %v242, 64
    %v245 = vpop.permute.xlu0 %244
    %v247 = vadd.f32 %v237, %v245
    %248 = vset.pattern.permute.xlu0 2
    %249 = vperm.xlu0 %248, %v226
    %v250 = vpop.permute.xlu0 %249
    %v252 = vmul.f32 %v250, %v77
    %v253 = vadd.f32 %v247, %v252
    %254 = vset.pattern.permute.xlu0 3
    %255 = vperm.xlu0 %254, %v226
    %v256 = vpop.permute.xlu0 %255
    %v258 = vmul.f32 %v256, %v77
    %260 = vrot.lane.b32.xlu0 %v258, 64
    %v261 = vpop.permute.xlu0 %260
    %v263 = vadd.f32 %v253, %v261
    %264 = vset.pattern.permute.xlu0 4
    %265 = vperm.xlu0 %264, %v226
    %v266 = vpop.permute.xlu0 %265
    %v268 = vmul.f32 %v266, %v78
    %v269 = vadd.f32 %v263, %v268
    %270 = vset.pattern.permute.xlu0 5
    %271 = vperm.xlu0 %270, %v226
    %v272 = vpop.permute.xlu0 %271
    %v274 = vmul.f32 %v272, %v78
    %276 = vrot.lane.b32.xlu0 %v274, 64
    %v277 = vpop.permute.xlu0 %276
    %v279 = vadd.f32 %v269, %v277
    %280 = vset.pattern.permute.xlu0 6
    %281 = vperm.xlu0 %280, %v226
    %v282 = vpop.permute.xlu0 %281
    %v284 = vmul.f32 %v282, %v79
    %v285 = vadd.f32 %v279, %v284
    %286 = vset.pattern.permute.xlu0 7
    %287 = vperm.xlu0 %286, %v226
    %v288 = vpop.permute.xlu0 %287
    %v290 = vmul.f32 %v288, %v79
    %292 = vrot.lane.b32.xlu0 %v290, 64
    %v293 = vpop.permute.xlu0 %292
    %v295 = vadd.f32 %v285, %v293
    %v296 = vmul.f32 %v295, %v231
    %vm297 = vcmask 523264
    %298 = vst.msk [vmem:[#allocation2] sm:$0xff] %vm297, %v296
    // Predicated region
    $region10: #{tpu_custom_call.1} parent=1 // pred_check
      _
    $region11: #{tpu_custom_call.1} parent=1 // pred_check_branch
      %300 = sbr.rel (0) target = $region13
    $region12: #{tpu_custom_call.1} parent=1 // pred_region
      %s302 = ssub.s32 128, 128
      %303 = vsyncadd [#allocation3], %s302
      %s305 = sshll.u32 [#allocation2], 4
      %s306 = int_to_ptr.vmem [resolvable:$true] %s305
      %308 = dma.vmem_to_hbm [thread:$0]  %s306, 128, %s2, [#allocation3]
    $region13: #{tpu_custom_call.1} parent=1 // pred_fallthru
      _
    // Predicated region
    $region14: #{tpu_custom_call.1} parent=1 // pred_check
      _
    $region15: #{tpu_custom_call.1} parent=1 // pred_check_branch
      %310 = sbr.rel (0) target = $region17
    $region16: #{tpu_custom_call.1} parent=1 // pred_region
      %311 = dma.done [#allocation3], 128
    $region17: #{tpu_custom_call.1} parent=1 // pred_fallthru
      _
    %312 = vsyncpa [#allocation3], 1

</llo_original>
